<compile_context>
chip_gen: v5e
topology: v5e:2x2
jax: 0.10.0
libtpu: 0.0.40
codegen_flags: <defaults>
</compile_context>

<pallas_src>
import functools

import jax
import jax.numpy as jnp
from jax.experimental import pallas as pl
from jax.experimental.pallas import tpu as pltpu


def inception_block_kernel(xs_ref, mask_ref, wb_ref, wst_ref, wmp_ref,
                           gamma_ref, beta_ref, out_ref, *, B, L, Kmax, eps):
    f32, bf16 = jnp.float32, jnp.bfloat16
    P = Kmax - 1
    PadL = P // 2
    Lp = L + P                       # per-batch segment width inside the slab
    Wo = (B - 1) * Lp + L            # output columns whose Kmax-window stays in-slab

    xs = xs_ref[...]                 # (Ci, B*Lp) f32, zero padding between batches
    mask = mask_ref[...]             # (1,  B*Lp) 1.0 on real-data columns, 0.0 on pad
    xs_bf = xs.astype(bf16)

    # ---- 1x1 bottleneck conv over the whole slab (zero pad columns stay zero) ----
    bott = jnp.dot(wb_ref[...].astype(bf16), xs_bf,
                   preferred_element_type=f32)                      # (Cb, B*Lp)
    bott_bf = bott.astype(bf16)

    # ---- all three branch convs as ONE im2col matmul ----
    # im2col row-block s holds the slab shifted by s taps; the stacked weight is
    # tap-aligned so every branch's output for (b, l) lands at column b*Lp + l.
    im2col = jnp.concatenate([bott_bf[:, s:s + Wo] for s in range(Kmax)],
                             axis=0)                                # (Kmax*Cb, Wo)
    y_conv = jnp.dot(wst_ref[...].astype(bf16), im2col,
                     preferred_element_type=f32)                    # (3*Co, Wo)

    # ---- MaxPool1d(3, stride=1, padding=1) branch + 1x1 conv ----
    # pad columns -> -inf so they never win the max (PyTorch maxpool padding), then
    # zeroed again so discarded columns stay finite for the matmul.
    neg_inf = jnp.float32(-jnp.inf)
    xm = jnp.where(mask > 0.5, xs, neg_inf)                         # (Ci, B*Lp)
    mp = jnp.maximum(jnp.maximum(xm[:, PadL - 1:PadL - 1 + Wo],
                                 xm[:, PadL:PadL + Wo]),
                     xm[:, PadL + 1:PadL + 1 + Wo])                 # (Ci, Wo)
    mp = jnp.where(mask[:, PadL:PadL + Wo] > 0.5, mp, 0.0)
    y_mp = jnp.dot(wmp_ref[...].astype(bf16), mp.astype(bf16),
                   preferred_element_type=f32)                      # (Co, Wo)

    z = jnp.concatenate([y_conv, y_mp], axis=0)                     # (4*Co, Wo)

    # ---- compact: drop inter-batch padding columns -> lane-dense (4*Co, B*L) ----
    zc = jnp.concatenate([z[:, b * Lp:b * Lp + L] for b in range(B)], axis=-1)

    # ---- BatchNorm1d (batch stats over (B, L), biased variance) + ReLU, f32 ----
    n = zc.shape[-1]
    mean = jnp.sum(zc, axis=-1, keepdims=True) * (1.0 / n)          # (4*Co, 1)
    d = zc - mean
    var = jnp.sum(d * d, axis=-1, keepdims=True) * (1.0 / n)
    yn = d * jax.lax.rsqrt(var + eps)
    out_ref[...] = jnp.maximum(yn * gamma_ref[...] + beta_ref[...], 0.0)


def inception_block(x, w_bottleneck, w_convs, w_maxpool, gamma, beta, eps=1e-5):
    """x: (B, Ci, L); PyTorch-layout weights:
       w_bottleneck (Cb, Ci, 1), w_convs[i] (Co, Cb, K_i), w_maxpool (Co, Ci, 1),
       gamma/beta (4*Co,). Returns (B, 4*Co, L) float32."""
    B, Ci, L = x.shape
    Cb = w_bottleneck.shape[0]
    Co = w_maxpool.shape[0]
    ks = [int(w.shape[-1]) for w in w_convs]
    Kmax = ks[0]
    assert Kmax == max(ks) and Kmax >= 3, "largest kernel first, kernel_size >= 3"

    P = Kmax - 1
    PadL, PadR = P // 2, P - P // 2
    Lp = L + P
    Ws = B * Lp

    f32 = jnp.float32
    # lane-folded, per-batch zero-padded input slab (Ci, B*Lp)
    xp = jnp.pad(x.astype(f32), ((0, 0), (0, 0), (PadL, PadR)))     # (B, Ci, Lp)
    x_slab = jnp.transpose(xp, (1, 0, 2)).reshape(Ci, Ws)

    # 1.0 on real-data columns, 0.0 on padding columns
    seg = jnp.concatenate([jnp.zeros((PadL,), f32),
                           jnp.ones((L,), f32),
                           jnp.zeros((PadR,), f32)])
    col_mask = jnp.tile(seg, B).reshape(1, Ws)

    # stack + tap-align the 3 branch weights into one (3*Co, Kmax*Cb) matrix
    def embed(w):                                   # w: (Co, Cb, K)
        K = w.shape[-1]
        off = PadL - (K - 1) // 2                   # same-padding tap offset
        we = jnp.zeros((Co, Kmax, Cb), f32)
        return we.at[:, off:off + K, :].set(jnp.transpose(w.astype(f32), (0, 2, 1)))
    w_stack = jnp.concatenate([embed(w) for w in w_convs],
                              axis=0).reshape(3 * Co, Kmax * Cb)

    wb = w_bottleneck.reshape(Cb, Ci).astype(f32)
    wmp = w_maxpool.reshape(Co, Ci).astype(f32)
    g = gamma.reshape(4 * Co, 1).astype(f32)
    bta = beta.reshape(4 * Co, 1).astype(f32)

    kern = functools.partial(inception_block_kernel, B=B, L=L, Kmax=Kmax, eps=eps)
    vmem = pl.BlockSpec(memory_space=pltpu.MemorySpace.VMEM)
    # NOTE: grid-less single invocation — the demo problem fits easily in VMEM.  For
    # production InceptionTime sizes, split into a gridded two-pass scheme (branch
    # compute + sum/sumsq reduce, then normalize) to use both v7x TensorCores.
    out2d = pl.pallas_call(
        kern,
        out_shape=jax.ShapeDtypeStruct((4 * Co, B * L), f32),
        in_specs=[vmem] * 7,
        out_specs=vmem,
        compiler_params=pltpu.CompilerParams(vmem_limit_bytes=32 * 1024 * 1024),
    )(x_slab, col_mask, wb, w_stack, wmp, g, bta)

    # (4*Co, B*L) lane-dense kernel output -> PyTorch (B, 4*Co, L)
    return jnp.transpose(out2d.reshape(4 * Co, B, L), (1, 0, 2))


if __name__ == "__main__":
    # InceptionBlock(in_channels=4, out_channels=8, norm='bn',
    #                bottleneck_channels=32, kernel_size=8, use_bottleneck=True)
    B, Ci, L = 2, 4, 32
    Co, Cb, Kmax = 8, 32, 8
    ks = [Kmax // (2 ** i) for i in range(3)]       # [8, 4, 2]

    key = jax.random.PRNGKey(0)
    k = jax.random.split(key, 6)
    x = jax.random.normal(k[0], (B, Ci, L), jnp.float32)
    w_bottleneck = 0.1 * jax.random.normal(k[1], (Cb, Ci, 1), jnp.float32)
    w_convs = [0.1 * jax.random.normal(k[2 + i], (Co, Cb, ks[i]), jnp.float32)
               for i in range(3)]
    w_maxpool = 0.1 * jax.random.normal(k[5], (Co, Ci, 1), jnp.float32)
    gamma = jnp.ones((4 * Co,), jnp.float32)        # BatchNorm1d weight init
    beta = jnp.zeros((4 * Co,), jnp.float32)        # BatchNorm1d bias init

    out = inception_block(x, w_bottleneck, w_convs, w_maxpool, gamma, beta)
    jax.block_until_ready(out)
    assert out.shape == (B, 4 * Co, L)
    assert bool(jnp.all(out >= 0.0))                # ReLU output is non-negative
    assert bool(jnp.all(jnp.isfinite(out)))
    print("KERNEL_OK")
</pallas_src>

<mosaic_0001>
module attributes {stable_mosaic.version = 11 : i64} {
  func.func @inception_block_kernel(%arg0: memref<4x78xf32, #tpu.memory_space<vmem>>, %arg1: memref<1x78xf32, #tpu.memory_space<vmem>>, %arg2: memref<32x4xf32, #tpu.memory_space<vmem>>, %arg3: memref<24x256xf32, #tpu.memory_space<vmem>>, %arg4: memref<8x4xf32, #tpu.memory_space<vmem>>, %arg5: memref<32x1xf32, #tpu.memory_space<vmem>>, %arg6: memref<32x1xf32, #tpu.memory_space<vmem>>, %arg7: memref<32x64xf32, #tpu.memory_space<vmem>>) attributes {dimension_semantics = [], scalar_prefetch = 0 : i64, scratch_operands = 0 : i64, tpu.core_type = #tpu.core_type<tc>} {
    %c0 = arith.constant 0 : index
    %c0_0 = arith.constant 0 : index
    %0 = vector.load %arg0[%c0, %c0_0] : memref<4x78xf32, #tpu.memory_space<vmem>>, vector<4x78xf32>
    %c0_1 = arith.constant 0 : index
    %c0_2 = arith.constant 0 : index
    %1 = vector.load %arg1[%c0_1, %c0_2] : memref<1x78xf32, #tpu.memory_space<vmem>>, vector<1x78xf32>
    %2 = arith.truncf %0 : vector<4x78xf32> to vector<4x78xbf16>
    %c0_3 = arith.constant 0 : index
    %c0_4 = arith.constant 0 : index
    %3 = vector.load %arg2[%c0_3, %c0_4] : memref<32x4xf32, #tpu.memory_space<vmem>>, vector<32x4xf32>
    %4 = arith.truncf %3 : vector<32x4xf32> to vector<32x4xbf16>
    %cst = arith.constant dense<0.000000e+00> : vector<32x78xf32>
    %5 = tpu.matmul %4, %2, %cst {dimension_numbers = #tpu.dot_dimension_numbers<[1], [0], [0], [1], [0, 0, 1, 1], [], []>} : vector<32x4xbf16>, vector<4x78xbf16>, vector<32x78xf32> -> vector<32x78xf32>
    %6 = arith.truncf %5 : vector<32x78xf32> to vector<32x78xbf16>
    %7 = vector.extract_strided_slice %6 {offsets = [0, 0], sizes = [32, 71], strides = [1, 1]} : vector<32x78xbf16> to vector<32x71xbf16>
    %8 = vector.extract_strided_slice %6 {offsets = [0, 1], sizes = [32, 71], strides = [1, 1]} : vector<32x78xbf16> to vector<32x71xbf16>
    %9 = vector.extract_strided_slice %6 {offsets = [0, 2], sizes = [32, 71], strides = [1, 1]} : vector<32x78xbf16> to vector<32x71xbf16>
    %10 = vector.extract_strided_slice %6 {offsets = [0, 3], sizes = [32, 71], strides = [1, 1]} : vector<32x78xbf16> to vector<32x71xbf16>
    %11 = vector.extract_strided_slice %6 {offsets = [0, 4], sizes = [32, 71], strides = [1, 1]} : vector<32x78xbf16> to vector<32x71xbf16>
    %12 = vector.extract_strided_slice %6 {offsets = [0, 5], sizes = [32, 71], strides = [1, 1]} : vector<32x78xbf16> to vector<32x71xbf16>
    %13 = vector.extract_strided_slice %6 {offsets = [0, 6], sizes = [32, 71], strides = [1, 1]} : vector<32x78xbf16> to vector<32x71xbf16>
    %14 = vector.extract_strided_slice %6 {offsets = [0, 7], sizes = [32, 71], strides = [1, 1]} : vector<32x78xbf16> to vector<32x71xbf16>
    %15 = tpu.concatenate %7, %8, %9, %10, %11, %12, %13, %14 in 0 : vector<32x71xbf16>, vector<32x71xbf16>, vector<32x71xbf16>, vector<32x71xbf16>, vector<32x71xbf16>, vector<32x71xbf16>, vector<32x71xbf16>, vector<32x71xbf16> -> vector<256x71xbf16>
    %c0_5 = arith.constant 0 : index
    %c0_6 = arith.constant 0 : index
    %16 = vector.load %arg3[%c0_5, %c0_6] : memref<24x256xf32, #tpu.memory_space<vmem>>, vector<24x256xf32>
    %17 = arith.truncf %16 : vector<24x256xf32> to vector<24x256xbf16>
    %cst_7 = arith.constant dense<0.000000e+00> : vector<24x71xf32>
    %18 = tpu.matmul %17, %15, %cst_7 {dimension_numbers = #tpu.dot_dimension_numbers<[1], [0], [0], [1], [0, 0, 1, 1], [], []>} : vector<24x256xbf16>, vector<256x71xbf16>, vector<24x71xf32> -> vector<24x71xf32>
    %cst_8 = arith.constant 5.000000e-01 : f32
    %19 = vector.broadcast %cst_8 : f32 to vector<1x78xf32>
    %20 = arith.cmpf ogt, %1, %19 : vector<1x78xf32>
    %cst_9 = arith.constant 0xFF800000 : f32
    %21 = vector.shape_cast %20 : vector<1x78xi1> to vector<1x78xi1>
    %22 = vector.broadcast %21 : vector<1x78xi1> to vector<4x78xi1>
    %23 = vector.broadcast %cst_9 : f32 to vector<4x78xf32>
    %24 = arith.select %22, %0, %23 : vector<4x78xi1>, vector<4x78xf32>
    %25 = vector.extract_strided_slice %24 {offsets = [0, 2], sizes = [4, 71], strides = [1, 1]} : vector<4x78xf32> to vector<4x71xf32>
    %26 = vector.extract_strided_slice %24 {offsets = [0, 3], sizes = [4, 71], strides = [1, 1]} : vector<4x78xf32> to vector<4x71xf32>
    %27 = arith.maximumf %25, %26 : vector<4x71xf32>
    %28 = vector.extract_strided_slice %24 {offsets = [0, 4], sizes = [4, 71], strides = [1, 1]} : vector<4x78xf32> to vector<4x71xf32>
    %29 = arith.maximumf %27, %28 : vector<4x71xf32>
    %30 = vector.extract_strided_slice %1 {offsets = [0, 3], sizes = [1, 71], strides = [1, 1]} : vector<1x78xf32> to vector<1x71xf32>
    %cst_10 = arith.constant 5.000000e-01 : f32
    %31 = vector.broadcast %cst_10 : f32 to vector<1x71xf32>
    %32 = arith.cmpf ogt, %30, %31 : vector<1x71xf32>
    %cst_11 = arith.constant 0.000000e+00 : f32
    %33 = vector.shape_cast %32 : vector<1x71xi1> to vector<1x71xi1>
    %34 = vector.broadcast %33 : vector<1x71xi1> to vector<4x71xi1>
    %35 = vector.broadcast %cst_11 : f32 to vector<4x71xf32>
    %36 = arith.select %34, %29, %35 : vector<4x71xi1>, vector<4x71xf32>
    %c0_12 = arith.constant 0 : index
    %c0_13 = arith.constant 0 : index
    %37 = vector.load %arg4[%c0_12, %c0_13] : memref<8x4xf32, #tpu.memory_space<vmem>>, vector<8x4xf32>
    %38 = arith.truncf %37 : vector<8x4xf32> to vector<8x4xbf16>
    %39 = arith.truncf %36 : vector<4x71xf32> to vector<4x71xbf16>
    %cst_14 = arith.constant dense<0.000000e+00> : vector<8x71xf32>
    %40 = tpu.matmul %38, %39, %cst_14 {dimension_numbers = #tpu.dot_dimension_numbers<[1], [0], [0], [1], [0, 0, 1, 1], [], []>} : vector<8x4xbf16>, vector<4x71xbf16>, vector<8x71xf32> -> vector<8x71xf32>
    %41 = tpu.concatenate %18, %40 in 0 : vector<24x71xf32>, vector<8x71xf32> -> vector<32x71xf32>
    %42 = vector.extract_strided_slice %41 {offsets = [0, 0], sizes = [32, 32], strides = [1, 1]} : vector<32x71xf32> to vector<32x32xf32>
    %43 = vector.extract_strided_slice %41 {offsets = [0, 39], sizes = [32, 32], strides = [1, 1]} : vector<32x71xf32> to vector<32x32xf32>
    %44 = tpu.concatenate %42, %43 in 1 : vector<32x32xf32>, vector<32x32xf32> -> vector<32x64xf32>
    %cst_15 = arith.constant dense<0.000000e+00> : vector<32xf32>
    %45 = vector.multi_reduction <add>, %44, %cst_15 [1] : vector<32x64xf32> to vector<32xf32>
    %46 = vector.shape_cast %45 : vector<32xf32> to vector<32x1xf32>
    %cst_16 = arith.constant 1.562500e-02 : f32
    %47 = vector.broadcast %cst_16 : f32 to vector<32x1xf32>
    %48 = arith.mulf %46, %47 : vector<32x1xf32>
    %49 = vector.broadcast %48 : vector<32x1xf32> to vector<32x64xf32>
    %50 = arith.subf %44, %49 : vector<32x64xf32>
    %51 = arith.mulf %50, %50 : vector<32x64xf32>
    %cst_17 = arith.constant dense<0.000000e+00> : vector<32xf32>
    %52 = vector.multi_reduction <add>, %51, %cst_17 [1] : vector<32x64xf32> to vector<32xf32>
    %53 = vector.shape_cast %52 : vector<32xf32> to vector<32x1xf32>
    %cst_18 = arith.constant 1.562500e-02 : f32
    %54 = vector.broadcast %cst_18 : f32 to vector<32x1xf32>
    %55 = arith.mulf %53, %54 : vector<32x1xf32>
    %cst_19 = arith.constant 9.99999974E-6 : f32
    %56 = vector.broadcast %cst_19 : f32 to vector<32x1xf32>
    %57 = arith.addf %55, %56 : vector<32x1xf32>
    %58 = math.rsqrt %57 : vector<32x1xf32>
    %59 = vector.broadcast %58 : vector<32x1xf32> to vector<32x64xf32>
    %60 = arith.mulf %50, %59 : vector<32x64xf32>
    %c0_20 = arith.constant 0 : index
    %c0_21 = arith.constant 0 : index
    %61 = vector.load %arg5[%c0_20, %c0_21] : memref<32x1xf32, #tpu.memory_space<vmem>>, vector<32x1xf32>
    %62 = vector.broadcast %61 : vector<32x1xf32> to vector<32x64xf32>
    %63 = arith.mulf %60, %62 : vector<32x64xf32>
    %c0_22 = arith.constant 0 : index
    %c0_23 = arith.constant 0 : index
    %64 = vector.load %arg6[%c0_22, %c0_23] : memref<32x1xf32, #tpu.memory_space<vmem>>, vector<32x1xf32>
    %65 = vector.broadcast %64 : vector<32x1xf32> to vector<32x64xf32>
    %66 = arith.addf %63, %65 : vector<32x64xf32>
    %cst_24 = arith.constant 0.000000e+00 : f32
    %67 = vector.broadcast %cst_24 : f32 to vector<32x64xf32>
    %68 = arith.maximumf %66, %67 : vector<32x64xf32>
    %c0_25 = arith.constant 0 : index
    %c0_26 = arith.constant 0 : index
    %69 = vector.load %arg7[%c0_25, %c0_26] : memref<32x64xf32, #tpu.memory_space<vmem>>, vector<32x64xf32>
    tpu.vector_store %arg7[%c0_25, %c0_26], %68 {strides = array<i32>} : memref<32x64xf32, #tpu.memory_space<vmem>>, vector<32x64xf32>,
    return
  }
}

</mosaic_0001>

<llo_original>
// kernel: tpu_custom_call.1
$region0: #{tpu_custom_call.1}
  #allocation0 [shape = 'u32[]', space=smem, size = 0x4, offset = 0x4, fixed_abs, tag = 'smem constant byte address 0x4 - core index']
  #allocation1 [shape = 'u32[72,128]{1,0:T(1,128)}', space=vmem, size = 0x9000, scoped, tag = 'internal scratch']
  %s0 = inlined_call_operand.vmem [shape: f32[4,78], index: 0, kind: input, shape index: {}]
  %s1 = inlined_call_operand.vmem [shape: f32[1,78], index: 1, kind: input, shape index: {}]
  %s2 = inlined_call_operand.vmem [shape: f32[32,4], index: 2, kind: input, shape index: {}]
  %s3 = inlined_call_operand.vmem [shape: f32[24,256], index: 3, kind: input, shape index: {}]
  %s4 = inlined_call_operand.vmem [shape: f32[8,4], index: 4, kind: input, shape index: {}]
  %s5 = inlined_call_operand.vmem [shape: f32[32,1], index: 5, kind: input, shape index: {}]
  %s6 = inlined_call_operand.vmem [shape: f32[32,1], index: 6, kind: input, shape index: {}]
  %s7 = inlined_call_operand.hbm [shape: f32[32,64], index: 7, kind: output, shape index: {}]
  %s8 = sld [smem:[#allocation0]]
  $region38: #{tpu_custom_call.1} parent=0
    _
  %s10 = ssub.s32 1, %s8
  %s11 = scalar_select 0, %s10, %s8
  $region1: #{tpu_custom_call.1} parent=0
    #allocation2 [shape = 'u8[16384]{0}', space=vmem, size = 0x4000, scoped, tag = 'output window, operand 0, single buffered']
    #allocation3 [shape = 's32[1]{0}', space=sflag, size = 0x4, scoped, tag = 'scoped memory for tpu_custom_call.1']
    %12 = vsyncpa [#allocation3], 0
    // Predicated region
    $region2: #{tpu_custom_call.1} parent=1 // pred_check
      _
    $region3: #{tpu_custom_call.1} parent=1 // pred_check_branch
      %14 = sbr.rel (0) target = $region5
    $region4: #{tpu_custom_call.1} parent=1 // pred_region
      _
    $region5: #{tpu_custom_call.1} parent=1 // pred_fallthru
      _
    // Predicated region
    $region6: #{tpu_custom_call.1} parent=1 // pred_check
      _
    $region7: #{tpu_custom_call.1} parent=1 // pred_check_branch
      %16 = sbr.rel (0) target = $region9
    $region8: #{tpu_custom_call.1} parent=1 // pred_region
      _
    $region9: #{tpu_custom_call.1} parent=1 // pred_fallthru
      _
    // Predicated region
    $region10: #{tpu_custom_call.1} parent=1 // pred_check
      _
    $region11: #{tpu_custom_call.1} parent=1 // pred_check_branch
      %18 = sbr.rel (0) target = $region13
    $region12: #{tpu_custom_call.1} parent=1 // pred_region
      _
    $region13: #{tpu_custom_call.1} parent=1 // pred_fallthru
      _
    // Predicated region
    $region14: #{tpu_custom_call.1} parent=1 // pred_check
      _
    $region15: #{tpu_custom_call.1} parent=1 // pred_check_branch
      %20 = sbr.rel (0) target = $region17
    $region16: #{tpu_custom_call.1} parent=1 // pred_region
      _
    $region17: #{tpu_custom_call.1} parent=1 // pred_fallthru
      _
    // Predicated region
    $region18: #{tpu_custom_call.1} parent=1 // pred_check
      _
    $region19: #{tpu_custom_call.1} parent=1 // pred_check_branch
      %22 = sbr.rel (0) target = $region21
    $region20: #{tpu_custom_call.1} parent=1 // pred_region
      _
    $region21: #{tpu_custom_call.1} parent=1 // pred_fallthru
      _
    // Predicated region
    $region22: #{tpu_custom_call.1} parent=1 // pred_check
      _
    $region23: #{tpu_custom_call.1} parent=1 // pred_check_branch
      %24 = sbr.rel (0) target = $region25
    $region24: #{tpu_custom_call.1} parent=1 // pred_region
      _
    $region25: #{tpu_custom_call.1} parent=1 // pred_fallthru
      _
    // Predicated region
    $region26: #{tpu_custom_call.1} parent=1 // pred_check
      _
    $region27: #{tpu_custom_call.1} parent=1 // pred_check_branch
      %26 = sbr.rel (0) target = $region29
    $region28: #{tpu_custom_call.1} parent=1 // pred_region
      _
    $region29: #{tpu_custom_call.1} parent=1 // pred_fallthru
      _
    %v28 = vld [vmem:[%s0] sm:$0xf]
    %v29 = vld [vmem:[%s1] sm:$0x1]
    %v30 = vpack.c.bf16 %v28, %v28
    %v31 = vld [vmem:[%s2] sm:$0xff]
    %v32 = vld [vmem:[%s2 + $0x8] sm:$0xff]
    %v33 = vld [vmem:[%s2 + $0x10] sm:$0xff]
    %v34 = vld [vmem:[%s2 + $0x18] sm:$0xff]
    %v35 = vpack.c.bf16 %v32, %v31
    %v36 = vpack.c.bf16 %v34, %v33
    %vm37 = vcmask 31744
    %v39 = vsel %vm37, %v35, 0
    %v42 = vsel %vm37, %v36, 0
    %vm44 = vcmask 1041408
    %v46 = vsel %vm44, %v30, 0
    %48 = vmatpush.bf16.msra.mxu0 0
    %49 = vmatpush.bf16.msra.mxu0 0
    %50 = vmatpush.bf16.msra.mxu0 0
    %51 = vmatpush.bf16.msra.mxu0 0
    %52 = vmatpush.bf16.msra.mxu0 0
    %53 = vmatpush.bf16.msra.mxu0 0
    %54 = vmatpush.bf16.msra.mxu0 0
    %55 = vmatpush.bf16.msra.mxu0 %v46
    %56 = vmatmul.bf16.gmra.mxu0 %v39
    %v57 = vpop.f32.mrf.mxu0
    %v58 = vadd.f32 0.0, %v57
    %v59 = vpop.f32.mrf.mxu0
    %v60 = vadd.f32 0.0, %v59
    %61 = vmatmul.bf16.gmra.mxu0 %v42
    %v62 = vpop.f32.mrf.mxu0
    %v63 = vadd.f32 0.0, %v62
    %v64 = vpop.f32.mrf.mxu0
    %v65 = vadd.f32 0.0, %v64
    %66 = vdwg.mxu0
    %v67 = vpack.c.bf16 %v58, %v58
    %v68 = vpack.c.bf16 %v60, %v60
    %v69 = vpack.c.bf16 %v63, %v63
    %v70 = vpack.c.bf16 %v65, %v65
    %v75 = vunpack.c.l.b16 %v67
    %v76 = vunpack.c.l.b16 %v68
    %v77 = vunpack.c.l.b16 %v69
    %v78 = vunpack.c.l.b16 %v70
    %v79 = vpack.c.b16 %v76, %v75
    %v80 = vpack.c.b16 %v78, %v77
    %83 = vrot.lane.b32.xlu0 %v79, 127
    %v84 = vpop.permute.xlu0 %83
    %85 = vrot.lane.b32.xlu0 %v80, 127
    %v86 = vpop.permute.xlu0 %85
    %89 = vrot.lane.b32.xlu0 %v79, 126
    %v90 = vpop.permute.xlu0 %89
    %91 = vrot.lane.b32.xlu0 %v80, 126
    %v92 = vpop.permute.xlu0 %91
    %95 = vrot.lane.b32.xlu0 %v79, 125
    %v96 = vpop.permute.xlu0 %95
    %97 = vrot.lane.b32.xlu0 %v80, 125
    %v98 = vpop.permute.xlu0 %97
    %101 = vrot.lane.b32.xlu0 %v79, 124
    %v102 = vpop.permute.xlu0 %101
    %103 = vrot.lane.b32.xlu0 %v80, 124
    %v104 = vpop.permute.xlu0 %103
    %107 = vrot.lane.b32.xlu0 %v79, 123
    %v108 = vpop.permute.xlu0 %107
    %109 = vrot.lane.b32.xlu0 %v80, 123
    %v110 = vpop.permute.xlu0 %109
    %113 = vrot.lane.b32.xlu0 %v79, 122
    %v114 = vpop.permute.xlu0 %113
    %115 = vrot.lane.b32.xlu0 %v80, 122
    %v116 = vpop.permute.xlu0 %115
    %119 = vrot.lane.b32.xlu0 %v79, 121
    %v120 = vpop.permute.xlu0 %119
    %121 = vrot.lane.b32.xlu0 %v80, 121
    %v122 = vpop.permute.xlu0 %121
    %v125 = vld [vmem:[%s3] sm:$0xff]
    %v126 = vld [vmem:[%s3 + $0x8] sm:$0xff]
    %v127 = vld [vmem:[%s3 + $0x10] sm:$0xff]
    %v128 = vld [vmem:[%s3 + $0x18] sm:$0xff]
    %v129 = vld [vmem:[%s3 + $0x20] sm:$0xff]
    %v130 = vld [vmem:[%s3 + $0x28] sm:$0xff]
    %v131 = vpack.c.bf16 %v127, %v125
    %v132 = vpack.c.bf16 %v128, %v126
    %v133 = vpack.c.bf16 %v129, %v129
    %v134 = vpack.c.bf16 %v130, %v130
    %135 = vmatpush.bf16.msra.mxu0 %v98
    %136 = vmatpush.bf16.msra.mxu0 %v96
    %137 = vmatpush.bf16.msra.mxu0 %v92
    %138 = vmatpush.bf16.msra.mxu0 %v90
    %139 = vmatpush.bf16.msra.mxu0 %v86
    %140 = vmatpush.bf16.msra.mxu0 %v84
    %141 = vmatpush.bf16.msra.mxu0 %v80
    %142 = vmatpush.bf16.msra.mxu0 %v79
    %143 = vmatmul.bf16.gmra.mxu0 %v131
    %v144 = vpop.f32.mrf.mxu0
    %v145 = vadd.f32 0.0, %v144
    %v146 = vpop.f32.mrf.mxu0
    %v147 = vadd.f32 0.0, %v146
    %148 = vmatmul.bf16.gmra.mxu0 %v133
    %v149 = vpop.f32.mrf.mxu0
    %v150 = vadd.f32 0.0, %v149
    %v151 = vpop.f32.mrf.mxu0
    %152 = vdwg.mxu0
    %153 = vmatpush.bf16.msra.mxu0 %v122
    %154 = vmatpush.bf16.msra.mxu0 %v120
    %155 = vmatpush.bf16.msra.mxu0 %v116
    %156 = vmatpush.bf16.msra.mxu0 %v114
    %157 = vmatpush.bf16.msra.mxu0 %v110
    %158 = vmatpush.bf16.msra.mxu0 %v108
    %159 = vmatpush.bf16.msra.mxu0 %v104
    %160 = vmatpush.bf16.msra.mxu0 %v102
    %161 = vmatmul.bf16.gmra.mxu0 %v132
    %v162 = vpop.f32.mrf.mxu0
    %v163 = vadd.f32 %v145, %v162
    %v164 = vpop.f32.mrf.mxu0
    %v165 = vadd.f32 %v147, %v164
    %166 = vmatmul.bf16.gmra.mxu0 %v134
    %v167 = vpop.f32.mrf.mxu0
    %v168 = vadd.f32 %v150, %v167
    %v169 = vpop.f32.mrf.mxu0
    %170 = vdwg.mxu0
    %vm171 = vcmp.gt.f32.partialorder %v29, 0.5
    %v172 = vsel %vm171, 1, 0
    %v173 = vperm.slane %v172, 0
    %vm174 = vcmp.eq.s32.totalorder %v173, 1
    %v175 = vsel %vm174, %v28, -inf
    %177 = vrot.lane.b32.xlu0 %v175, 127
    %v178 = vpop.permute.xlu0 %177
    %v180 = vmax.f32 %v175, %v178
    %181 = vrot.lane.b32.xlu0 %v175, 126
    %v182 = vpop.permute.xlu0 %181
    %v184 = vmax.f32 %v180, %v182
    %186 = vrot.lane.b32.xlu0 %v184, 1
    %v187 = vpop.permute.xlu0 %186
    %v189 = vsel %vm174, %v187, 0.0
    %v190 = vld [vmem:[%s4] sm:$0xff]
    %v191 = vpack.c.bf16 %v190, %v190
    %v192 = vpack.c.bf16 %v189, %v189
    %194 = vrot.lane.b32.xlu0 %v192, 125
    %v195 = vpop.permute.xlu0 %194
    %v197 = vsel %vm37, %v191, 0
    %v200 = vsel %vm44, %v195, 0
    %202 = vmatpush.bf16.msra.mxu0 0
    %203 = vmatpush.bf16.msra.mxu0 0
    %204 = vmatpush.bf16.msra.mxu0 0
    %205 = vmatpush.bf16.msra.mxu0 0
    %206 = vmatpush.bf16.msra.mxu0 0
    %207 = vmatpush.bf16.msra.mxu0 0
    %208 = vmatpush.bf16.msra.mxu0 0
    %209 = vmatpush.bf16.msra.mxu0 %v200
    %210 = vmatmul.bf16.gmra.mxu0 %v197
    %v211 = vpop.f32.mrf.mxu0
    %v212 = vadd.f32 0.0, %v211
    %v213 = vpop.f32.mrf.mxu0
    %214 = vdwg.mxu0
    %219 = vrot.lane.b32.xlu0 %v163, 121
    %v220 = vpop.permute.xlu0 %219
    %221 = vrot.lane.b32.xlu0 %v165, 121
    %v222 = vpop.permute.xlu0 %221
    %223 = vrot.lane.b32.xlu0 %v168, 121
    %v224 = vpop.permute.xlu0 %223
    %225 = vrot.lane.b32.xlu0 %v212, 121
    %v226 = vpop.permute.xlu0 %225
    %vm231 = vcmask 261120
    %v232 = vsel %vm231, %v163, %v220
    %v233 = vsel %vm231, %v165, %v222
    %v234 = vsel %vm231, %v168, %v224
    %v235 = vsel %vm231, %v212, %v226
    %vm236 = vcmask 523264
    %v237 = vsel %vm236, %v232, 0.0
    %238 = vadd.xlane.f32.xlu0 %v237
    %v239 = vpop.xlane.xlu0 %238
    %v240 = vsel %vm236, %v233, 0.0
    %241 = vadd.xlane.f32.xlu0 %v240
    %v242 = vpop.xlane.xlu0 %241
    %v243 = vsel %vm236, %v234, 0.0
    %244 = vadd.xlane.f32.xlu0 %v243
    %v245 = vpop.xlane.xlu0 %244
    %v246 = vsel %vm236, %v235, 0.0
    %247 = vadd.xlane.f32.xlu0 %v246
    %v248 = vpop.xlane.xlu0 %247
    %v249 = vmul.f32 %v239, 0.015625
    %v250 = vmul.f32 %v242, 0.015625
    %v251 = vmul.f32 %v245, 0.015625
    %v252 = vmul.f32 %v248, 0.015625
    %v253 = vsub.f32 %v232, %v249
    %v254 = vsub.f32 %v233, %v250
    %v255 = vsub.f32 %v234, %v251
    %v256 = vsub.f32 %v235, %v252
    %v257 = vmul.f32 %v253, %v253
    %v258 = vmul.f32 %v254, %v254
    %v259 = vmul.f32 %v255, %v255
    %v260 = vmul.f32 %v256, %v256
    %v261 = vsel %vm236, %v257, 0.0
    %262 = vadd.xlane.f32.xlu0 %v261
    %v263 = vpop.xlane.xlu0 %262
    %v264 = vsel %vm236, %v258, 0.0
    %265 = vadd.xlane.f32.xlu0 %v264
    %v266 = vpop.xlane.xlu0 %265
    %v267 = vsel %vm236, %v259, 0.0
    %268 = vadd.xlane.f32.xlu0 %v267
    %v269 = vpop.xlane.xlu0 %268
    %v270 = vsel %vm236, %v260, 0.0
    %271 = vadd.xlane.f32.xlu0 %v270
    %v272 = vpop.xlane.xlu0 %271
    %v273 = vmul.f32 %v263, 0.015625
    %v274 = vmul.f32 %v266, 0.015625
    %v275 = vmul.f32 %v269, 0.015625
    %v276 = vmul.f32 %v272, 0.015625
    %v277 = vadd.f32 %v273, 1e-05
    %v278 = vadd.f32 %v274, 1e-05
    %v279 = vadd.f32 %v275, 1e-05
    %v280 = vadd.f32 %v276, 1e-05
    %v281 = vrsqrt.pop %v277
    %v282 = vmul.f32 %v281, %v277
    %v283 = vmul.f32 %v282, %v281
    %v284 = vmul.f32 0.5, %v283
    %v285 = vsub.f32 1.5, %v284
    %v286 = vmul.f32 %v281, %v285
    %vm287 = vweird.f32 %v277
    %vm288 = vweird.f32 %v281
    %vm289 = vmor %vm287, %vm288
    %v290 = vsel %vm289, %v281, %v286
    %v291 = vrsqrt.pop %v278
    %v292 = vmul.f32 %v291, %v278
    %v293 = vmul.f32 %v292, %v291
    %v294 = vmul.f32 0.5, %v293
    %v295 = vsub.f32 1.5, %v294
    %v296 = vmul.f32 %v291, %v295
    %vm297 = vweird.f32 %v278
    %vm298 = vweird.f32 %v291
    %vm299 = vmor %vm297, %vm298
    %v300 = vsel %vm299, %v291, %v296
    %v301 = vrsqrt.pop %v279
    %v302 = vmul.f32 %v301, %v279
    %v303 = vmul.f32 %v302, %v301
    %v304 = vmul.f32 0.5, %v303
    %v305 = vsub.f32 1.5, %v304
    %v306 = vmul.f32 %v301, %v305
    %vm307 = vweird.f32 %v279
    %vm308 = vweird.f32 %v301
    %vm309 = vmor %vm307, %vm308
    %v310 = vsel %vm309, %v301, %v306
    %v311 = vrsqrt.pop %v280
    %v312 = vmul.f32 %v311, %v280
    %v313 = vmul.f32 %v312, %v311
    %v314 = vmul.f32 0.5, %v313
    %v315 = vsub.f32 1.5, %v314
    %v316 = vmul.f32 %v311, %v315
    %vm317 = vweird.f32 %v280
    %vm318 = vweird.f32 %v311
    %vm319 = vmor %vm317, %vm318
    %v320 = vsel %vm319, %v311, %v316
    %v321 = vmul.f32 %v253, %v290
    %v322 = vmul.f32 %v254, %v300
    %v323 = vmul.f32 %v255, %v310
    %v324 = vmul.f32 %v256, %v320
    %v325 = vld [vmem:[%s5] sm:$0xff]
    %v326 = vld [vmem:[%s5 + $0x8] sm:$0xff]
    %v327 = vld [vmem:[%s5 + $0x10] sm:$0xff]
    %v328 = vld [vmem:[%s5 + $0x18] sm:$0xff]
    %330 = vset.pattern.permute.xlu0 0
    %331 = vperm.xlu0 %330, %v325
    %v332 = vpop.permute.xlu0 %331
    %335 = vset.pattern.permute.xlu0 0
    %336 = vperm.xlu0 %335, %v326
    %v337 = vpop.permute.xlu0 %336
    %340 = vset.pattern.permute.xlu0 0
    %341 = vperm.xlu0 %340, %v327
    %v342 = vpop.permute.xlu0 %341
    %345 = vset.pattern.permute.xlu0 0
    %346 = vperm.xlu0 %345, %v328
    %v347 = vpop.permute.xlu0 %346
    %v349 = vmul.f32 %v321, %v332
    %v350 = vmul.f32 %v322, %v337
    %v351 = vmul.f32 %v323, %v342
    %v352 = vmul.f32 %v324, %v347
    %v353 = vld [vmem:[%s6] sm:$0xff]
    %v354 = vld [vmem:[%s6 + $0x8] sm:$0xff]
    %v355 = vld [vmem:[%s6 + $0x10] sm:$0xff]
    %v356 = vld [vmem:[%s6 + $0x18] sm:$0xff]
    %358 = vset.pattern.permute.xlu0 0
    %359 = vperm.xlu0 %358, %v353
    %v360 = vpop.permute.xlu0 %359
    %363 = vset.pattern.permute.xlu0 0
    %364 = vperm.xlu0 %363, %v354
    %v365 = vpop.permute.xlu0 %364
    %368 = vset.pattern.permute.xlu0 0
    %369 = vperm.xlu0 %368, %v355
    %v370 = vpop.permute.xlu0 %369
    %373 = vset.pattern.permute.xlu0 0
    %374 = vperm.xlu0 %373, %v356
    %v375 = vpop.permute.xlu0 %374
    %v377 = vadd.f32 %v349, %v360
    %v378 = vadd.f32 %v350, %v365
    %v379 = vadd.f32 %v351, %v370
    %v380 = vadd.f32 %v352, %v375
    %v381 = vmax.f32 %v377, 0.0
    %v382 = vmax.f32 %v378, 0.0
    %v383 = vmax.f32 %v379, 0.0
    %v384 = vmax.f32 %v380, 0.0
    %385 = vst.msk [vmem:[#allocation2] sm:$0xff] %vm236, %v381
    %386 = vst.msk [vmem:[#allocation2 + $0x8] sm:$0xff] %vm236, %v382
    %387 = vst.msk [vmem:[#allocation2 + $0x10] sm:$0xff] %vm236, %v383
    %388 = vst.msk [vmem:[#allocation2 + $0x18] sm:$0xff] %vm236, %v384
    // Predicated region
    $region30: #{tpu_custom_call.1} parent=1 // pred_check
      _
    $region31: #{tpu_custom_call.1} parent=1 // pred_check_branch
      %390 = sbr.rel (0) target = $region33
    $region32: #{tpu_custom_call.1} parent=1 // pred_region
      %392 = vsyncadd [#allocation3], 0
      %s393 = sshll.u32 [#allocation2], 4
      %s394 = int_to_ptr.vmem [resolvable:$true] %s393
      %s395 = sshll.u32 %s7, 4
      %s396 = int_to_ptr.hbm [resolvable:$true] %s395
      %401 = dma.vmem_to_hbm [thread:$0]  %s394, 512, %s396, [#allocation3], 128, 128, 8
    $region33: #{tpu_custom_call.1} parent=1 // pred_fallthru
      _
    // Predicated region
    $region34: #{tpu_custom_call.1} parent=1 // pred_check
      _
    $region35: #{tpu_custom_call.1} parent=1 // pred_check_branch
      %403 = sbr.rel (0) target = $region37
    $region36: #{tpu_custom_call.1} parent=1 // pred_region
      %405 = dma.done [#allocation3], 512
    $region37: #{tpu_custom_call.1} parent=1 // pred_fallthru
      _
    %406 = vsyncpa [#allocation3], 1

</llo_original>
